<compile_context>
chip_gen: v6e
topology: v6e:2x2x1
jax: 0.10.0
libtpu: 0.0.40
codegen_flags: <defaults>
</compile_context>

<pallas_src>
import jax
import jax.numpy as jnp
from jax.experimental import pallas as pl
from jax.experimental.pallas import tpu as pltpu


def _round_up(x, m):
    return ((x + m - 1) // m) * m


def _linproj_kernel(x_ref, w_ref, b_ref, o_ref):
    # x_ref: (TM, K)  w_ref: (K, N)  b_ref: (1, N) f32  o_ref: (TM, N)
    y = jnp.dot(x_ref[...], w_ref[...], preferred_element_type=jnp.float32)
    y = y + b_ref[...]                      # bias already f32 (cast hoisted)
    # F.normalize(y, dim=-1): y / max(||y||_2, 1e-12) == y * rsqrt(max(sq, 1e-24))
    sq = jnp.sum(y * y, axis=-1, keepdims=True)
    inv = jax.lax.rsqrt(jnp.maximum(sq, 1e-24))   # EUP rsqrt: own VLIW slot
    o_ref[...] = (y * inv).astype(o_ref.dtype)


def _normalize_ref(y):
    return y / jnp.maximum(jnp.sqrt(jnp.sum(y * y, axis=-1, keepdims=True)), 1e-12)


def linear_projection(x, w_t, b, *, tm=2048, out_dtype=None, compute_dtype=None,
                      jnp_fallback_rows=16, vmem_limit_bytes=48 * 1024 * 1024):
    """x: [M, K], w_t: [K, N] (= W.T of nn.Linear weight), b: [N] -> [M, N]."""
    M, K = x.shape
    K2, N = w_t.shape
    assert K == K2 and b.shape == (N,)
    out_dtype = out_dtype or x.dtype

    # Tiny batches: a 1-step grid has no pipelining; plain XLA fusion wins.
    if M <= jnp_fallback_rows:
        y = jnp.dot(x.astype(jnp.float32), w_t.astype(jnp.float32))
        y = y + b.astype(jnp.float32)
        return _normalize_ref(y).astype(out_dtype)

    # Optional bf16 streaming of the memory-bound operands (f32 accumulate).
    xc = x if compute_dtype is None else x.astype(compute_dtype)
    wc = w_t if compute_dtype is None else w_t.astype(compute_dtype)
    b2 = b.astype(jnp.float32).reshape(1, N)      # f32 bias, cast done once

    # ---- M-tile choice -------------------------------------------------------
    # Sublane multiple for the streamed dtype: f32 -> 8, bf16 -> 16, int8 -> 32.
    sub = max(8, 32 // jnp.dtype(xc.dtype).itemsize)
    if M <= tm:
        tm_eff = M                                # single full-extent block
    else:
        tm_eff = _round_up(min(tm, M), sub)
        # Megacore (v7x): keep >= 4 "parallel" grid steps when M allows it,
        # without shrinking tiles below what amortizes per-step overhead.
        if pl.cdiv(M, tm_eff) < 4:
            cand = _round_up(pl.cdiv(M, 4), sub)
            if cand >= 512:
                tm_eff = cand
    grid = (pl.cdiv(M, tm_eff),)

    itemsize = lambda a: jnp.dtype(a.dtype).itemsize
    cost = pl.CostEstimate(
        flops=2 * M * K * N + 3 * M * N,
        transcendentals=M,
        bytes_accessed=(xc.size * itemsize(xc) + wc.size * itemsize(wc)
                        + b2.size * 4 + M * N * jnp.dtype(out_dtype).itemsize),
    )

    return pl.pallas_call(
        _linproj_kernel,
        out_shape=jax.ShapeDtypeStruct((M, N), out_dtype),
        grid_spec=pltpu.PrefetchScalarGridSpec(
            num_scalar_prefetch=0,
            grid=grid,
            in_specs=[
                # x: streamed M tiles; K is the full array dim (no HBM pad).
                pl.BlockSpec((tm_eff, K), lambda i: (i, 0)),
                # Constant index_map -> weight/bias stay resident across grid.
                pl.BlockSpec((K, N), lambda i: (0, 0)),
                pl.BlockSpec((1, N), lambda i: (0, 0)),
            ],
            out_specs=pl.BlockSpec((tm_eff, N), lambda i: (i, 0)),
        ),
        compiler_params=pltpu.CompilerParams(
            dimension_semantics=("parallel",),
            vmem_limit_bytes=vmem_limit_bytes,
        ),
        cost_estimate=cost,
    )(xc, wc, b2)


def _reference(x, W, b):
    y = x @ W.T + b
    return _normalize_ref(y)


if __name__ == "__main__":
    # Shapes consistent with the module: in_dim=32, dim=128.
    in_dim, dim = 32, 128
    key = jax.random.PRNGKey(0)
    kx1, kx2, kx3, kw, kb = jax.random.split(key, 5)

    # Deterministic init mimicking nn.Linear: U(-1/sqrt(in_dim), 1/sqrt(in_dim))
    bound = 1.0 / (in_dim ** 0.5)
    W = jax.random.uniform(kw, (dim, in_dim), jnp.float32, -bound, bound)  # (out, in)
    b = jax.random.uniform(kb, (dim,), jnp.float32, -bound, bound)

    # Case 1: multi-step cdiv grid with a ragged last tile (600 = 2*256 + 88).
    x1 = jax.random.normal(kx1, (600, in_dim), jnp.float32)
    out1 = jax.block_until_ready(linear_projection(x1, W.T, b, tm=256))
    assert out1.shape == (600, dim)
    assert jnp.allclose(out1, _reference(x1, W, b), atol=1e-5, rtol=1e-5)

    # Case 2: ragged small batch -> single full-extent block, no padding copies.
    x2 = jax.random.normal(kx2, (37, in_dim), jnp.float32)
    out2 = jax.block_until_ready(linear_projection(x2, W.T, b))
    assert out2.shape == (37, dim)
    assert jnp.allclose(out2, _reference(x2, W, b), atol=1e-5, rtol=1e-5)

    # Case 3: tiny batch -> plain-jnp fallback path.
    x3 = jax.random.normal(kx3, (8, in_dim), jnp.float32)
    out3 = jax.block_until_ready(linear_projection(x3, W.T, b))
    assert out3.shape == (8, dim)
    assert jnp.allclose(out3, _reference(x3, W, b), atol=1e-5, rtol=1e-5)

    # Case 4: bf16 streaming of x / weight (f32 accumulate + normalize).
    out4 = jax.block_until_ready(
        linear_projection(x1, W.T, b, tm=256, compute_dtype=jnp.bfloat16))
    assert out4.shape == (600, dim)
    assert jnp.allclose(out4, _reference(x1, W, b), atol=2e-2, rtol=2e-2)

    print("KERNEL_OK")
</pallas_src>

<mosaic_0001>
module attributes {stable_mosaic.version = 11 : i64} {
  func.func @_linproj_kernel(%arg0: i32, %arg1: memref<256x32xf32, #tpu.memory_space<vmem>>, %arg2: memref<32x128xf32, #tpu.memory_space<vmem>>, %arg3: memref<1x128xf32, #tpu.memory_space<vmem>>, %arg4: memref<256x128xf32, #tpu.memory_space<vmem>>) attributes {dimension_semantics = [#tpu.dimension_semantics<parallel>], iteration_bounds = array<i64: 3>, scalar_prefetch = 0 : i64, scratch_operands = 0 : i64, tpu.core_type = #tpu.core_type<tc>, window_params = [{transform_indices = @transform_0, window_bounds = array<i64: 256, 32>}, {pipeline_mode = #tpu.pipeline_mode<synchronous>, transform_indices = @transform_1, window_bounds = array<i64: 32, 128>}, {pipeline_mode = #tpu.pipeline_mode<synchronous>, transform_indices = @transform_2, window_bounds = array<i64: 1, 128>}, {transform_indices = @transform_3, window_bounds = array<i64: 256, 128>}]} {
    %c0 = arith.constant 0 : index
    %c0_0 = arith.constant 0 : index
    %0 = vector.load %arg1[%c0, %c0_0] : memref<256x32xf32, #tpu.memory_space<vmem>>, vector<256x32xf32>
    %c0_1 = arith.constant 0 : index
    %c0_2 = arith.constant 0 : index
    %1 = vector.load %arg2[%c0_1, %c0_2] : memref<32x128xf32, #tpu.memory_space<vmem>>, vector<32x128xf32>
    %cst = arith.constant dense<0.000000e+00> : vector<256x128xf32>
    %2 = tpu.matmul %0, %1, %cst {dimension_numbers = #tpu.dot_dimension_numbers<[1], [0], [0], [1], [0, 0, 1, 1], [], []>} : vector<256x32xf32>, vector<32x128xf32>, vector<256x128xf32> -> vector<256x128xf32>
    %c0_3 = arith.constant 0 : index
    %c0_4 = arith.constant 0 : index
    %3 = vector.load %arg3[%c0_3, %c0_4] : memref<1x128xf32, #tpu.memory_space<vmem>>, vector<1x128xf32>
    %4 = vector.broadcast %3 : vector<1x128xf32> to vector<256x128xf32>
    %5 = arith.addf %2, %4 : vector<256x128xf32>
    %6 = arith.mulf %5, %5 : vector<256x128xf32>
    %cst_5 = arith.constant dense<0.000000e+00> : vector<256xf32>
    %7 = vector.multi_reduction <add>, %6, %cst_5 [1] : vector<256x128xf32> to vector<256xf32>
    %8 = vector.shape_cast %7 : vector<256xf32> to vector<256x1xf32>
    %cst_6 = arith.constant 1.000000e-24 : f32
    %9 = vector.broadcast %cst_6 : f32 to vector<256x1xf32>
    %10 = arith.maximumf %8, %9 : vector<256x1xf32>
    %11 = math.rsqrt %10 : vector<256x1xf32>
    %12 = vector.broadcast %11 : vector<256x1xf32> to vector<256x128xf32>
    %13 = arith.mulf %5, %12 : vector<256x128xf32>
    %c0_7 = arith.constant 0 : index
    %c0_8 = arith.constant 0 : index
    %14 = vector.load %arg4[%c0_7, %c0_8] : memref<256x128xf32, #tpu.memory_space<vmem>>, vector<256x128xf32>
    tpu.vector_store %arg4[%c0_7, %c0_8], %13 {strides = array<i32>} : memref<256x128xf32, #tpu.memory_space<vmem>>, vector<256x128xf32>,
    return
  }
  func.func @transform_0(%arg0: i32) -> (i32, i32) {
    %c0_i32 = arith.constant 0 : i32
    %c0_i32_0 = arith.constant 0 : i32
    return %arg0, %c0_i32 : i32, i32
  }
  func.func @transform_1(%arg0: i32) -> (i32, i32) {
    %c0_i32 = arith.constant 0 : i32
    %c0_i32_0 = arith.constant 0 : i32
    %c0_i32_1 = arith.constant 0 : i32
    return %c0_i32, %c0_i32_0 : i32, i32
  }
  func.func @transform_2(%arg0: i32) -> (i32, i32) {
    %c0_i32 = arith.constant 0 : i32
    %c0_i32_0 = arith.constant 0 : i32
    %c0_i32_1 = arith.constant 0 : i32
    return %c0_i32, %c0_i32_0 : i32, i32
  }
  func.func @transform_3(%arg0: i32) -> (i32, i32) {
    %c0_i32 = arith.constant 0 : i32
    %c0_i32_0 = arith.constant 0 : i32
    return %arg0, %c0_i32 : i32, i32
  }
}

</mosaic_0001>

<llo_original>
// kernel: tpu_custom_call.1
$region0: #{tpu_custom_call.1}
  #allocation0 [shape = 'u32[]', space=smem, size = 0x4, offset = 0x4, fixed_abs, tag = 'smem constant byte address 0x4 - core index']
  #allocation1 [shape = 'u32[144,128]{1,0:T(1,128)}', space=vmem, size = 0x12000, scoped, tag = 'internal scratch']
  %s0 = inlined_call_operand.vmem [shape: f32[600,32], index: 0, kind: input, shape index: {}]
  %s1 = inlined_call_operand.vmem [shape: f32[32,128], index: 1, kind: input, shape index: {}]
  %s2 = inlined_call_operand.vmem [shape: f32[1,128], index: 2, kind: input, shape index: {}]
  %s3 = inlined_call_operand.hbm [shape: f32[600,128], index: 3, kind: output, shape index: {}]
  %s4 = sld [smem:[#allocation0]]
  $region45: #{tpu_custom_call.1} parent=0
    _
  %s6 = ssub.s32 1, %s4
  %s7 = scalar_select 0, %s6, %s4
  $region1: #{tpu_custom_call.1} parent=0
    #allocation2 [shape = 'u8[262144]{0}', space=vmem, size = 0x40000, scoped, tag = 'output window, operand 0']
    #allocation3 [shape = 's32[2]{0}', space=sflag, size = 0x8, scoped, tag = 'scoped memory for tpu_custom_call.1']
    %8 = vsyncpa [#allocation3], 0
    %s9 = scalar_lea.sflag [#allocation3], 1
    %10 = vsyncpa %s9, 0
    loop: start=0, step=1, limit=5
    $region2: #{tpu_custom_call.1} parent=1 // loop_pre_header
      _
    $region3: #{tpu_custom_call.1} parent=1 // loop_header
      %s12 = sphi 0, %s16
      %p13 = scmp.ge.s32.totalorder %s12, 5
      %s22 = sphi 0, %s24
      %s25 = sphi 0, %s22
      %s26 = sphi 0, %s25
      %s42 = sphi 0, %s26
      %s46 = sphi 0, %s46
      %s48 = sphi 0, %s46
      %s49 = sphi 0, %s48
      %s63 = sphi 0, %s49
      %s67 = sphi 0, %s67
      %s69 = sphi 0, %s67
      %s70 = sphi 0, %s69
      %s84 = sphi 0, %s70
      %s90 = sphi 0, %s92
      %s93 = sphi 0, %s90
      %s94 = sphi 0, %s93
      %s110 = sphi 0, %s94
    $region4: #{tpu_custom_call.1} parent=1 // loop_header_branch
      %15 = sbr.rel (%p13) target = $region8
    $region5: #{tpu_custom_call.1} parent=1 // loop_body
      %s17 = ssub.s32 %s12, 1
      %s18 = ssub.s32 %s12, 2
      %s19 = sadd.s32 %s12, 1
      %s20 = ssub.s32 %s12, %s19
      %p21 = scmp.eq.s32.totalorder %s20, 0
      %s23 = sadd.s32 %s22, 1
      %s24 = scalar_select %p21, %s22, %s23
      %p27 = pneg %p21
      %p28 = scmp.eq.s32.totalorder %s12, 2
      %p29 = por %p27, %p28
      %p30 = scmp.ne.s32.totalorder %s22, %s25
      %p31 = scmp.eq.s32.totalorder %s12, 0
      %p32 = por %p30, %p31
      %p33 = scmp.ne.s32.totalorder %s22, %s25
      %p34 = scmp.eq.s32.totalorder %s17, 2
      %p35 = por %p33, %p34
      %p36 = scmp.ne.s32.totalorder %s25, %s26
      %p37 = scmp.eq.s32.totalorder %s17, 0
      %p38 = por %p36, %p37
      %p39 = scmp.ne.s32.totalorder %s25, %s26
      %p40 = scmp.eq.s32.totalorder %s18, 2
      %p41 = por %p39, %p40
      %p43 = scmp.ne.s32.totalorder %s26, %s42
      %p44 = scmp.eq.s32.totalorder %s18, 0
      %p45 = por %p43, %p44
      %s47 = sadd.s32 %s46, 1
      %p50 = scmp.eq.s32.totalorder %s12, 2
      %p51 = scmp.ne.s32.totalorder %s46, %s48
      %p52 = scmp.eq.s32.totalorder %s12, 0
      %p53 = por %p51, %p52
      %p54 = scmp.ne.s32.totalorder %s46, %s48
      %p55 = scmp.eq.s32.totalorder %s17, 2
      %p56 = por %p54, %p55
      %p57 = scmp.ne.s32.totalorder %s48, %s49
      %p58 = scmp.eq.s32.totalorder %s17, 0
      %p59 = por %p57, %p58
      %p60 = scmp.ne.s32.totalorder %s48, %s49
      %p61 = scmp.eq.s32.totalorder %s18, 2
      %p62 = por %p60, %p61
      %p64 = scmp.ne.s32.totalorder %s49, %s63
      %p65 = scmp.eq.s32.totalorder %s18, 0
      %p66 = por %p64, %p65
      %s68 = sadd.s32 %s67, 1
      %p71 = scmp.eq.s32.totalorder %s12, 2
      %p72 = scmp.ne.s32.totalorder %s67, %s69
      %p73 = scmp.eq.s32.totalorder %s12, 0
      %p74 = por %p72, %p73
      %p75 = scmp.ne.s32.totalorder %s67, %s69
      %p76 = scmp.eq.s32.totalorder %s17, 2
      %p77 = por %p75, %p76
      %p78 = scmp.ne.s32.totalorder %s69, %s70
      %p79 = scmp.eq.s32.totalorder %s17, 0
      %p80 = por %p78, %p79
      %p81 = scmp.ne.s32.totalorder %s69, %s70
      %p82 = scmp.eq.s32.totalorder %s18, 2
      %p83 = por %p81, %p82
      %p85 = scmp.ne.s32.totalorder %s70, %s84
      %p86 = scmp.eq.s32.totalorder %s18, 0
      %p87 = por %p85, %p86
      %s88 = ssub.s32 %s12, %s19
      %p89 = scmp.eq.s32.totalorder %s88, 0
      %s91 = sadd.s32 %s90, 1
      %s92 = scalar_select %p89, %s90, %s91
      %p95 = pneg %p89
      %p96 = scmp.eq.s32.totalorder %s12, 2
      %p97 = por %p95, %p96
      %p98 = scmp.ne.s32.totalorder %s90, %s93
      %p99 = scmp.eq.s32.totalorder %s12, 0
      %p100 = por %p98, %p99
      %p101 = scmp.ne.s32.totalorder %s90, %s93
      %p102 = scmp.eq.s32.totalorder %s17, 2
      %p103 = por %p101, %p102
      %p104 = scmp.ne.s32.totalorder %s93, %s94
      %p105 = scmp.eq.s32.totalorder %s17, 0
      %p106 = por %p104, %p105
      %p107 = scmp.ne.s32.totalorder %s93, %s94
      %p108 = scmp.eq.s32.totalorder %s18, 2
      %p109 = por %p107, %p108
      %p111 = scmp.ne.s32.totalorder %s94, %s110
      %p112 = scmp.eq.s32.totalorder %s18, 0
      %p113 = por %p111, %p112
      %p114 = scmp.le.s32.totalorder 1, %s12
      %p115 = scmp.lt.s32.totalorder %s12, 4
      %p116 = pnand %p114, %p115
      %p117 = pneg %p116
      // Predicated region
      $region9: #{tpu_custom_call.1} parent=5 // pred_check
        _
      $region10: #{tpu_custom_call.1} parent=5 // pred_check_branch
        %119 = sbr.rel (%p116) target = $region12
      $region11: #{tpu_custom_call.1} parent=5 // pred_region
        %s120 = ssub.s32 %s12, 1
        // Predicated region
        $region13: #{tpu_custom_call.1} parent=11 // pred_check
          %p121 = pneg %p59
        $region14: #{tpu_custom_call.1} parent=11 // pred_check_branch
          %123 = sbr.rel (%p121) target = $region16
        $region15: #{tpu_custom_call.1} parent=11 // pred_region
          _
        $region16: #{tpu_custom_call.1} parent=11 // pred_fallthru
          _
        // Predicated region
        $region17: #{tpu_custom_call.1} parent=11 // pred_check
          %p124 = pneg %p80
        $region18: #{tpu_custom_call.1} parent=11 // pred_check_branch
          %126 = sbr.rel (%p124) target = $region20
        $region19: #{tpu_custom_call.1} parent=11 // pred_region
          _
        $region20: #{tpu_custom_call.1} parent=11 // pred_fallthru
          _
      $region12: #{tpu_custom_call.1} parent=5 // pred_fallthru
        _
      %p127 = scmp.lt.s32.totalorder %s12, 3
      // Predicated region
      $region21: #{tpu_custom_call.1} parent=5 // pred_check
        %p128 = pneg %p127
      $region22: #{tpu_custom_call.1} parent=5 // pred_check_branch
        %130 = sbr.rel (%p128) target = $region24
      $region23: #{tpu_custom_call.1} parent=5 // pred_region
        // Predicated region
        $region25: #{tpu_custom_call.1} parent=23 // pred_check
          %p131 = pneg %p32
        $region26: #{tpu_custom_call.1} parent=23 // pred_check_branch
          %133 = sbr.rel (%p131) target = $region28
        $region27: #{tpu_custom_call.1} parent=23 // pred_region
          %s134 = smul.u32 32, %s12
          %s135 = ssub.s32 75, %s134
          %p136 = scmp.lt.s32.totalorder %s135, 32
          %s137 = scalar_select %p136, %s135, 32
          %s138 = smul.u32 128, %s137
          %p139 = scmp.lt.s32.totalorder %s134, 74
          %s140 = scalar_select %p139, %s134, 74
          %s141 = smul.addr %s140, 8
          %s142 = scalar_lea.vmem %s0, %s141
          %s143 = smul.u32 32, %s12
          %s144 = ssub.s32 75, %s143
          %p145 = scmp.lt.s32.totalorder %s144, 32
          %s146 = scalar_select %p145, %s144, 32
          %s147 = smul.u32 128, %s146
        $region28: #{tpu_custom_call.1} parent=23 // pred_fallthru
          _
      $region24: #{tpu_custom_call.1} parent=5 // pred_fallthru
        _
      %p148 = scmp.le.s32.totalorder 1, %s12
      %p149 = scmp.lt.s32.totalorder %s12, 4
      %p150 = pnand %p148, %p149
      %p151 = pneg %p150
      // Predicated region
      $region29: #{tpu_custom_call.1} parent=5 // pred_check
        _
      $region30: #{tpu_custom_call.1} parent=5 // pred_check_branch
        %153 = sbr.rel (%p150) target = $region32
      $region31: #{tpu_custom_call.1} parent=5 // pred_region
        %s154 = ssub.s32 %s12, 1
        %s155 = smul.u32 32, %s17
        %s156 = ssub.s32 75, %s155
        %p157 = scmp.lt.s32.totalorder %s156, 32
        %s158 = scalar_select %p157, %s156, 32
        %s159 = smul.u32 128, %s158
        %p160 = scmp.lt.s32.totalorder %s155, 74
        %s161 = scalar_select %p160, %s155, 74
        %s162 = smul.addr %s161, 8
        %s163 = scalar_lea.vmem %s0, %s162
        %p164 = pneg %p38
        %p165 = pneg %p35
        %p166 = pneg %p59
        %p167 = pneg %p56
        %p168 = pneg %p80
        %p169 = pneg %p77
        %p170 = pneg %p106
        %p171 = pneg %p103
        %s172 = sand.u32 %s93, 1
        %s173 = scalar_lea.sflag [#allocation3], %s172
        %s174 = sand.u32 %s93, 1
        %s175 = smul.addr %s174, 256
        %s176 = scalar_lea.vmem [#allocation2], %s175
        %s177 = smul.u32 32, %s17
        %s178 = ssub.s32 75, %s177
        %p179 = scmp.lt.s32.totalorder %s178, 32
        %s180 = scalar_select %p179, %s178, 32
        %s181 = smul.u32 128, %s180
        %p182 = scmp.lt.s32.totalorder %s177, 74
        %s183 = scalar_select %p182, %s177, 74
        %s184 = smul.addr %s183, 8
        %s185 = scalar_lea.vmem %s0, %s184
        %s186 = smul.u32 32, %s17
        %s187 = ssub.s32 75, %s186
        %p188 = scmp.lt.s32.totalorder %s187, 32
        %s189 = scalar_select %p188, %s187, 32
        %s190 = smul.u32 128, %s189
        %s191 = smul.u32 32, %s17
        %s192 = ssub.s32 75, %s191
        %p193 = scmp.lt.s32.totalorder %s192, 32
        %s194 = scalar_select %p193, %s192, 32
        %s195 = smul.u32 128, %s194
        %v196 = vld [vmem:[%s185] sm:$0xff]
        %v197 = vld [vmem:[%s185 + $0x8] sm:$0xff]
        %v198 = vld [vmem:[%s185 + $0x10] sm:$0xff]
        %v199 = vld [vmem:[%s185 + $0x18] sm:$0xff]
        %v200 = vld [vmem:[%s185 + $0x20] sm:$0xff]
        %v201 = vld [vmem:[%s185 + $0x28] sm:$0xff]
        %v202 = vld [vmem:[%s185 + $0x30] sm:$0xff]
        %v203 = vld [vmem:[%s185 + $0x38] sm:$0xff]
        %v204 = vld [vmem:[%s185 + $0x40] sm:$0xff]
        %v205 = vld [vmem:[%s185 + $0x48] sm:$0xff]
        %v206 = vld [vmem:[%s185 + $0x50] sm:$0xff]
        %v207 = vld [vmem:[%s185 + $0x58] sm:$0xff]
        %v208 = vld [vmem:[%s185 + $0x60] sm:$0xff]
        %v209 = vld [vmem:[%s185 + $0x68] sm:$0xff]
        %v210 = vld [vmem:[%s185 + $0x70] sm:$0xff]
        %v211 = vld [vmem:[%s185 + $0x78] sm:$0xff]
        %v212 = vld [vmem:[%s185 + $0x80] sm:$0xff]
        %v213 = vld [vmem:[%s185 + $0x88] sm:$0xff]
        %v214 = vld [vmem:[%s185 + $0x90] sm:$0xff]
        %v215 = vld [vmem:[%s185 + $0x98] sm:$0xff]
        %v216 = vld [vmem:[%s185 + $0xa0] sm:$0xff]
        %v217 = vld [vmem:[%s185 + $0xa8] sm:$0xff]
        %v218 = vld [vmem:[%s185 + $0xb0] sm:$0xff]
        %v219 = vld [vmem:[%s185 + $0xb8] sm:$0xff]
        %v220 = vld [vmem:[%s185 + $0xc0] sm:$0xff]
        %v221 = vld [vmem:[%s185 + $0xc8] sm:$0xff]
        %v222 = vld [vmem:[%s185 + $0xd0] sm:$0xff]
        %v223 = vld [vmem:[%s185 + $0xd8] sm:$0xff]
        %v224 = vld [vmem:[%s185 + $0xe0] sm:$0xff]
        %v225 = vld [vmem:[%s185 + $0xe8] sm:$0xff]
        %v226 = vld [vmem:[%s185 + $0xf0] sm:$0xff]
        %v227 = vld [vmem:[%s185 + $0xf8] sm:$0xff]
        %v228 = vld [vmem:[%s1] sm:$0xff]
        %v229 = vld [vmem:[%s1 + $0x8] sm:$0xff]
        %v230 = vld [vmem:[%s1 + $0x10] sm:$0xff]
        %v231 = vld [vmem:[%s1 + $0x18] sm:$0xff]
        %v232 = vld [vmem:[%s2] sm:$0x1]
        %v234 = vlaneseq
        %v235 = vshrl.u32 %v234, 7
        %v236 = vsub.s32 0, %v235
        %v237 = vrot.slane %v232, %v236
        %vm239 = vcmask 261120
        %v241 = vsel %vm239, %v196, 0
        %v244 = vsel %vm239, %v197, 0
        %v247 = vsel %vm239, %v198, 0
        %v250 = vsel %vm239, %v199, 0
        %v253 = vsel %vm239, %v200, 0
        %v256 = vsel %vm239, %v201, 0
        %v259 = vsel %vm239, %v202, 0
        %v262 = vsel %vm239, %v203, 0
        %v265 = vsel %vm239, %v204, 0
        %v268 = vsel %vm239, %v205, 0
        %v271 = vsel %vm239, %v206, 0
        %v274 = vsel %vm239, %v207, 0
        %v277 = vsel %vm239, %v208, 0
        %v280 = vsel %vm239, %v209, 0
        %v283 = vsel %vm239, %v210, 0
        %v286 = vsel %vm239, %v211, 0
        %v289 = vsel %vm239, %v212, 0
        %v292 = vsel %vm239, %v213, 0
        %v295 = vsel %vm239, %v214, 0
        %v298 = vsel %vm239, %v215, 0
        %v301 = vsel %vm239, %v216, 0
        %v304 = vsel %vm239, %v217, 0
        %v307 = vsel %vm239, %v218, 0
        %v310 = vsel %vm239, %v219, 0
        %v313 = vsel %vm239, %v220, 0
        %v316 = vsel %vm239, %v221, 0
        %v319 = vsel %vm239, %v222, 0
        %v322 = vsel %vm239, %v223, 0
        %v325 = vsel %vm239, %v224, 0
        %v328 = vsel %vm239, %v225, 0
        %v331 = vsel %vm239, %v226, 0
        %v334 = vsel %vm239, %v227, 0
        %336 = vmatprep.subr.mxu0 0.0
        %337 = vmatpush1.msra.mxu0 0.0
        %338 = vmatprep.subr.mxu0 0.0
        %339 = vmatpush1.msra.mxu0 0.0
        %340 = vmatprep.subr.mxu0 0.0
        %341 = vmatpush1.msra.mxu0 0.0
        %342 = vmatprep.subr.mxu0 0.0
        %343 = vmatpush1.msra.mxu0 0.0
        %344 = vmatprep.subr.mxu0 0.0
        %345 = vmatpush1.msra.mxu0 0.0
        %346 = vmatprep.subr.mxu0 0.0
        %347 = vmatpush1.msra.mxu0 0.0
        %348 = vmatprep.subr.mxu0 0.0
        %349 = vmatpush1.msra.mxu0 0.0
        %350 = vmatprep.subr.mxu0 0.0
        %351 = vmatpush1.msra.mxu0 0.0
        %352 = vmatprep.subr.mxu0 0.0
        %353 = vmatpush1.msra.mxu0 0.0
        %354 = vmatprep.subr.mxu0 0.0
        %355 = vmatpush1.msra.mxu0 0.0
        %356 = vmatprep.subr.mxu0 0.0
        %357 = vmatpush1.msra.mxu0 0.0
        %358 = vmatprep.subr.mxu0 0.0
        %359 = vmatpush1.msra.mxu0 0.0
        %360 = vmatprep.subr.mxu0 0.0
        %361 = vmatpush1.msra.mxu0 %v231
        %362 = vmatprep.subr.mxu0 0.0
        %363 = vmatpush1.msra.mxu0 %v230
        %364 = vmatprep.subr.mxu0 0.0
        %365 = vmatpush1.msra.mxu0 %v229
        %366 = vmatprep.subr.mxu0 0.0
        %367 = vmatpush1.msra.mxu0 %v228
        %368 = vmatprep.subr.mxu0 0.0
        %369 = vmatpush2.msra.mxu0 0.0
        %370 = vmatprep.subr.mxu0 0.0
        %371 = vmatpush2.msra.mxu0 0.0
        %372 = vmatprep.subr.mxu0 0.0
        %373 = vmatpush2.msra.mxu0 0.0
        %374 = vmatprep.subr.mxu0 0.0
        %375 = vmatpush2.msra.mxu0 0.0
        %376 = vmatprep.subr.mxu0 0.0
        %377 = vmatpush2.msra.mxu0 0.0
        %378 = vmatprep.subr.mxu0 0.0
        %379 = vmatpush2.msra.mxu0 0.0
        %380 = vmatprep.subr.mxu0 0.0
        %381 = vmatpush2.msra.mxu0 0.0
        %382 = vmatprep.subr.mxu0 0.0
        %383 = vmatpush2.msra.mxu0 0.0
        %384 = vmatprep.subr.mxu0 0.0
        %385 = vmatpush2.msra.mxu0 0.0
        %386 = vmatprep.subr.mxu0 0.0
        %387 = vmatpush2.msra.mxu0 0.0
        %388 = vmatprep.subr.mxu0 0.0
        %389 = vmatpush2.msra.mxu0 0.0
        %390 = vmatprep.subr.mxu0 0.0
        %391 = vmatpush2.msra.mxu0 0.0
        %392 = vmatprep.subr.mxu0 0.0
        %393 = vmatpush2.msra.mxu0 0.0
        %394 = vmatprep.subr.mxu0 0.0
        %395 = vmatpush2.msra.mxu0 0.0
        %396 = vmatprep.subr.mxu0 0.0
        %397 = vmatpush2.msra.mxu0 0.0
        %398 = vmatprep.subr.mxu0 0.0
        %399 = vmatpush2.msra.mxu0 0.0
        %400 = vmatprep.mubr.f32.mxu0 0.0
        %401 = vmatmul.mubr.f32.gmra.mxu0 %v241
        %v402 = vpop.f32.mrf.mxu0
        %v403 = vadd.f32 %v237, %v402
        %v404 = vpop.f32.mrf.mxu0
        %405 = vmatprep.mubr.f32.mxu0 0.0
        %406 = vmatmul.mubr.f32.gmra.mxu0 %v244
        %v407 = vpop.f32.mrf.mxu0
        %v408 = vadd.f32 %v237, %v407
        %v409 = vpop.f32.mrf.mxu0
        %410 = vmatprep.mubr.f32.mxu0 0.0
        %411 = vmatmul.mubr.f32.gmra.mxu0 %v247
        %v412 = vpop.f32.mrf.mxu0
        %v413 = vadd.f32 %v237, %v412
        %v414 = vpop.f32.mrf.mxu0
        %415 = vmatprep.mubr.f32.mxu0 0.0
        %416 = vmatmul.mubr.f32.gmra.mxu0 %v250
        %v417 = vpop.f32.mrf.mxu0
        %v418 = vadd.f32 %v237, %v417
        %v419 = vpop.f32.mrf.mxu0
        %420 = vmatprep.mubr.f32.mxu0 0.0
        %421 = vmatmul.mubr.f32.gmra.mxu0 %v253
        %v422 = vpop.f32.mrf.mxu0
        %v423 = vadd.f32 %v237, %v422
        %v424 = vpop.f32.mrf.mxu0
        %425 = vmatprep.mubr.f32.mxu0 0.0
        %426 = vmatmul.mubr.f32.gmra.mxu0 %v256
        %v427 = vpop.f32.mrf.mxu0
        %v428 = vadd.f32 %v237, %v427
        %v429 = vpop.f32.mrf.mxu0
        %430 = vmatprep.mubr.f32.mxu0 0.0
        %431 = vmatmul.mubr.f32.gmra.mxu0 %v259
        %v432 = vpop.f32.mrf.mxu0
        %v433 = vadd.f32 %v237, %v432
        %v434 = vpop.f32.mrf.mxu0
        %435 = vmatprep.mubr.f32.mxu0 0.0
        %436 = vmatmul.mubr.f32.gmra.mxu0 %v262
        %v437 = vpop.f32.mrf.mxu0
        %v438 = vadd.f32 %v237, %v437
        %v439 = vpop.f32.mrf.mxu0
        %440 = vmatprep.mubr.f32.mxu0 0.0
        %441 = vmatmul.mubr.f32.gmra.mxu0 %v265
        %v442 = vpop.f32.mrf.mxu0
        %v443 = vadd.f32 %v237, %v442
        %v444 = vpop.f32.mrf.mxu0
        %445 = vmatprep.mubr.f32.mxu0 0.0
        %446 = vmatmul.mubr.f32.gmra.mxu0 %v268
        %v447 = vpop.f32.mrf.mxu0
        %v448 = vadd.f32 %v237, %v447
        %v449 = vpop.f32.mrf.mxu0
        %450 = vmatprep.mubr.f32.mxu0 0.0
        %451 = vmatmul.mubr.f32.gmra.mxu0 %v271
        %v452 = vpop.f32.mrf.mxu0
        %v453 = vadd.f32 %v237, %v452
        %v454 = vpop.f32.mrf.mxu0
        %455 = vmatprep.mubr.f32.mxu0 0.0
        %456 = vmatmul.mubr.f32.gmra.mxu0 %v274
        %v457 = vpop.f32.mrf.mxu0
        %v458 = vadd.f32 %v237, %v457
        %v459 = vpop.f32.mrf.mxu0
        %460 = vmatprep.mubr.f32.mxu0 0.0
        %461 = vmatmul.mubr.f32.gmra.mxu0 %v277
        %v462 = vpop.f32.mrf.mxu0
        %v463 = vadd.f32 %v237, %v462
        %v464 = vpop.f32.mrf.mxu0
        %465 = vmatprep.mubr.f32.mxu0 0.0
        %466 = vmatmul.mubr.f32.gmra.mxu0 %v280
        %v467 = vpop.f32.mrf.mxu0
        %v468 = vadd.f32 %v237, %v467
        %v469 = vpop.f32.mrf.mxu0
        %470 = vmatprep.mubr.f32.mxu0 0.0
        %471 = vmatmul.mubr.f32.gmra.mxu0 %v283
        %v472 = vpop.f32.mrf.mxu0
        %v473 = vadd.f32 %v237, %v472
        %v474 = vpop.f32.mrf.mxu0
        %475 = vmatprep.mubr.f32.mxu0 0.0
        %476 = vmatmul.mubr.f32.gmra.mxu0 %v286
        %v477 = vpop.f32.mrf.mxu0
        %v478 = vadd.f32 %v237, %v477
        %v479 = vpop.f32.mrf.mxu0
        %480 = vmatprep.mubr.f32.mxu0 0.0
        %481 = vmatmul.mubr.f32.gmra.mxu0 %v289
        %v482 = vpop.f32.mrf.mxu0
        %v483 = vadd.f32 %v237, %v482
        %v484 = vpop.f32.mrf.mxu0
        %485 = vmatprep.mubr.f32.mxu0 0.0
        %486 = vmatmul.mubr.f32.gmra.mxu0 %v292
        %v487 = vpop.f32.mrf.mxu0
        %v488 = vadd.f32 %v237, %v487
        %v489 = vpop.f32.mrf.mxu0
        %490 = vmatprep.mubr.f32.mxu0 0.0
        %491 = vmatmul.mubr.f32.gmra.mxu0 %v295
        %v492 = vpop.f32.mrf.mxu0
        %v493 = vadd.f32 %v237, %v492
        %v494 = vpop.f32.mrf.mxu0
        %495 = vmatprep.mubr.f32.mxu0 0.0
        %496 = vmatmul.mubr.f32.gmra.mxu0 %v298
        %v497 = vpop.f32.mrf.mxu0
        %v498 = vadd.f32 %v237, %v497
        %v499 = vpop.f32.mrf.mxu0
        %500 = vmatprep.mubr.f32.mxu0 0.0
        %501 = vmatmul.mubr.f32.gmra.mxu0 %v301
        %v502 = vpop.f32.mrf.mxu0
        %v503 = vadd.f32 %v237, %v502
        %v504 = vpop.f32.mrf.mxu0
        %505 = vmatprep.mubr.f32.mxu0 0.0
        %506 = vmatmul.mubr.f32.gmra.mxu0 %v304
        %v507 = vpop.f32.mrf.mxu0
        %v508 = vadd.f32 %v237, %v507
        %v509 = vpop.f32.mrf.mxu0
        %510 = vmatprep.mubr.f32.mxu0 0.0
        %511 = vmatmul.mubr.f32.gmra.mxu0 %v307
        %v512 = vpop.f32.mrf.mxu0
        %v513 = vadd.f32 %v237, %v512
        %v514 = vpop.f32.mrf.mxu0
        %515 = vmatprep.mubr.f32.mxu0 0.0
        %516 = vmatmul.mubr.f32.gmra.mxu0 %v310
        %v517 = vpop.f32.mrf.mxu0
        %v518 = vadd.f32 %v237, %v517
        %v519 = vpop.f32.mrf.mxu0
        %520 = vmatprep.mubr.f32.mxu0 0.0
        %521 = vmatmul.mubr.f32.gmra.mxu0 %v313
        %v522 = vpop.f32.mrf.mxu0
        %v523 = vadd.f32 %v237, %v522
        %v524 = vpop.f32.mrf.mxu0
        %525 = vmatprep.mubr.f32.mxu0 0.0
        %526 = vmatmul.mubr.f32.gmra.mxu0 %v316
        %v527 = vpop.f32.mrf.mxu0
        %v528 = vadd.f32 %v237, %v527
        %v529 = vpop.f32.mrf.mxu0
        %530 = vmatprep.mubr.f32.mxu0 0.0
        %531 = vmatmul.mubr.f32.gmra.mxu0 %v319
        %v532 = vpop.f32.mrf.mxu0
        %v533 = vadd.f32 %v237, %v532
        %v534 = vpop.f32.mrf.mxu0
        %535 = vmatprep.mubr.f32.mxu0 0.0
        %536 = vmatmul.mubr.f32.gmra.mxu0 %v322
        %v537 = vpop.f32.mrf.mxu0
        %v538 = vadd.f32 %v237, %v537
        %v539 = vpop.f32.mrf.mxu0
        %540 = vmatprep.mubr.f32.mxu0 0.0
        %541 = vmatmul.mubr.f32.gmra.mxu0 %v325
        %v542 = vpop.f32.mrf.mxu0
        %v543 = vadd.f32 %v237, %v542
        %v544 = vpop.f32.mrf.mxu0
        %545 = vmatprep.mubr.f32.mxu0 0.0
        %546 = vmatmul.mubr.f32.gmra.mxu0 %v328
        %v547 = vpop.f32.mrf.mxu0
        %v548 = vadd.f32 %v237, %v547
        %v549 = vpop.f32.mrf.mxu0
        %550 = vmatprep.mubr.f32.mxu0 0.0
        %551 = vmatmul.mubr.f32.gmra.mxu0 %v331
        %v552 = vpop.f32.mrf.mxu0
        %v553 = vadd.f32 %v237, %v552
        %v554 = vpop.f32.mrf.mxu0
        %555 = vmatprep.mubr.f32.mxu0 0.0
        %556 = vmatmul.mubr.f32.gmra.mxu0 %v334
        %v557 = vpop.f32.mrf.mxu0
        %v558 = vadd.f32 %v237, %v557
        %v559 = vpop.f32.mrf.mxu0
        %560 = vdwg.mxu0
        %v561 = vmul.f32 %v403, %v403
        %v562 = vmul.f32 %v408, %v408
        %v563 = vmul.f32 %v413, %v413
        %v564 = vmul.f32 %v418, %v418
        %v565 = vmul.f32 %v423, %v423
        %v566 = vmul.f32 %v428, %v428
        %v567 = vmul.f32 %v433, %v433
        %v568 = vmul.f32 %v438, %v438
        %v569 = vmul.f32 %v443, %v443
        %v570 = vmul.f32 %v448, %v448
        %v571 = vmul.f32 %v453, %v453
        %v572 = vmul.f32 %v458, %v458
        %v573 = vmul.f32 %v463, %v463
        %v574 = vmul.f32 %v468, %v468
        %v575 = vmul.f32 %v473, %v473
        %v576 = vmul.f32 %v478, %v478
        %v577 = vmul.f32 %v483, %v483
        %v578 = vmul.f32 %v488, %v488
        %v579 = vmul.f32 %v493, %v493
        %v580 = vmul.f32 %v498, %v498
        %v581 = vmul.f32 %v503, %v503
        %v582 = vmul.f32 %v508, %v508
        %v583 = vmul.f32 %v513, %v513
        %v584 = vmul.f32 %v518, %v518
        %v585 = vmul.f32 %v523, %v523
        %v586 = vmul.f32 %v528, %v528
        %v587 = vmul.f32 %v533, %v533
        %v588 = vmul.f32 %v538, %v538
        %v589 = vmul.f32 %v543, %v543
        %v590 = vmul.f32 %v548, %v548
        %v591 = vmul.f32 %v553, %v553
        %v592 = vmul.f32 %v558, %v558
        %593 = vadd.xlane.f32.xlu0 %v561
        %v594 = vpop.xlane.xlu0 %593
        %595 = vadd.xlane.f32.xlu0 %v562
        %v596 = vpop.xlane.xlu0 %595
        %597 = vadd.xlane.f32.xlu0 %v563
        %v598 = vpop.xlane.xlu0 %597
        %599 = vadd.xlane.f32.xlu0 %v564
        %v600 = vpop.xlane.xlu0 %599
        %601 = vadd.xlane.f32.xlu0 %v565
        %v602 = vpop.xlane.xlu0 %601
        %603 = vadd.xlane.f32.xlu0 %v566
        %v604 = vpop.xlane.xlu0 %603
        %605 = vadd.xlane.f32.xlu0 %v567
        %v606 = vpop.xlane.xlu0 %605
        %607 = vadd.xlane.f32.xlu0 %v568
        %v608 = vpop.xlane.xlu0 %607
        %609 = vadd.xlane.f32.xlu0 %v569
        %v610 = vpop.xlane.xlu0 %609
        %611 = vadd.xlane.f32.xlu0 %v570
        %v612 = vpop.xlane.xlu0 %611
        %613 = vadd.xlane.f32.xlu0 %v571
        %v614 = vpop.xlane.xlu0 %613
        %615 = vadd.xlane.f32.xlu0 %v572
        %v616 = vpop.xlane.xlu0 %615
        %617 = vadd.xlane.f32.xlu0 %v573
        %v618 = vpop.xlane.xlu0 %617
        %619 = vadd.xlane.f32.xlu0 %v574
        %v620 = vpop.xlane.xlu0 %619
        %621 = vadd.xlane.f32.xlu0 %v575
        %v622 = vpop.xlane.xlu0 %621
        %623 = vadd.xlane.f32.xlu0 %v576
        %v624 = vpop.xlane.xlu0 %623
        %625 = vadd.xlane.f32.xlu0 %v577
        %v626 = vpop.xlane.xlu0 %625
        %627 = vadd.xlane.f32.xlu0 %v578
        %v628 = vpop.xlane.xlu0 %627
        %629 = vadd.xlane.f32.xlu0 %v579
        %v630 = vpop.xlane.xlu0 %629
        %631 = vadd.xlane.f32.xlu0 %v580
        %v632 = vpop.xlane.xlu0 %631
        %633 = vadd.xlane.f32.xlu0 %v581
        %v634 = vpop.xlane.xlu0 %633
        %635 = vadd.xlane.f32.xlu0 %v582
        %v636 = vpop.xlane.xlu0 %635
        %637 = vadd.xlane.f32.xlu0 %v583
        %v638 = vpop.xlane.xlu0 %637
        %639 = vadd.xlane.f32.xlu0 %v584
        %v640 = vpop.xlane.xlu0 %639
        %641 = vadd.xlane.f32.xlu0 %v585
        %v642 = vpop.xlane.xlu0 %641
        %643 = vadd.xlane.f32.xlu0 %v586
        %v644 = vpop.xlane.xlu0 %643
        %645 = vadd.xlane.f32.xlu0 %v587
        %v646 = vpop.xlane.xlu0 %645
        %647 = vadd.xlane.f32.xlu0 %v588
        %v648 = vpop.xlane.xlu0 %647
        %649 = vadd.xlane.f32.xlu0 %v589
        %v650 = vpop.xlane.xlu0 %649
        %651 = vadd.xlane.f32.xlu0 %v590
        %v652 = vpop.xlane.xlu0 %651
        %653 = vadd.xlane.f32.xlu0 %v591
        %v654 = vpop.xlane.xlu0 %653
        %655 = vadd.xlane.f32.xlu0 %v592
        %v656 = vpop.xlane.xlu0 %655
        %v657 = vmax.f32 %v594, 1e-24
        %v658 = vmax.f32 %v596, 1e-24
        %v659 = vmax.f32 %v598, 1e-24
        %v660 = vmax.f32 %v600, 1e-24
        %v661 = vmax.f32 %v602, 1e-24
        %v662 = vmax.f32 %v604, 1e-24
        %v663 = vmax.f32 %v606, 1e-24
        %v664 = vmax.f32 %v608, 1e-24
        %v665 = vmax.f32 %v610, 1e-24
        %v666 = vmax.f32 %v612, 1e-24
        %v667 = vmax.f32 %v614, 1e-24
        %v668 = vmax.f32 %v616, 1e-24
        %v669 = vmax.f32 %v618, 1e-24
        %v670 = vmax.f32 %v620, 1e-24
        %v671 = vmax.f32 %v622, 1e-24
        %v672 = vmax.f32 %v624, 1e-24
        %v673 = vmax.f32 %v626, 1e-24
        %v674 = vmax.f32 %v628, 1e-24
        %v675 = vmax.f32 %v630, 1e-24
        %v676 = vmax.f32 %v632, 1e-24
        %v677 = vmax.f32 %v634, 1e-24
        %v678 = vmax.f32 %v636, 1e-24
        %v679 = vmax.f32 %v638, 1e-24
        %v680 = vmax.f32 %v640, 1e-24
        %v681 = vmax.f32 %v642, 1e-24
        %v682 = vmax.f32 %v644, 1e-24
        %v683 = vmax.f32 %v646, 1e-24
        %v684 = vmax.f32 %v648, 1e-24
        %v685 = vmax.f32 %v650, 1e-24
        %v686 = vmax.f32 %v652, 1e-24
        %v687 = vmax.f32 %v654, 1e-24
        %v688 = vmax.f32 %v656, 1e-24
        %v689 = vrsqrt.pop %v657
        %v690 = vrsqrt.pop %v658
        %v691 = vrsqrt.pop %v659
        %v692 = vrsqrt.pop %v660
        %v693 = vrsqrt.pop %v661
        %v694 = vrsqrt.pop %v662
        %v695 = vrsqrt.pop %v663
        %v696 = vrsqrt.pop %v664
        %v697 = vrsqrt.pop %v665
        %v698 = vrsqrt.pop %v666
        %v699 = vrsqrt.pop %v667
        %v700 = vrsqrt.pop %v668
        %v701 = vrsqrt.pop %v669
        %v702 = vrsqrt.pop %v670
        %v703 = vrsqrt.pop %v671
        %v704 = vrsqrt.pop %v672
        %v705 = vrsqrt.pop %v673
        %v706 = vrsqrt.pop %v674
        %v707 = vrsqrt.pop %v675
        %v708 = vrsqrt.pop %v676
        %v709 = vrsqrt.pop %v677
        %v710 = vrsqrt.pop %v678
        %v711 = vrsqrt.pop %v679
        %v712 = vrsqrt.pop %v680
        %v713 = vrsqrt.pop %v681
        %v714 = vrsqrt.pop %v682
        %v715 = vrsqrt.pop %v683
        %v716 = vrsqrt.pop %v684
        %v717 = vrsqrt.pop %v685
        %v718 = vrsqrt.pop %v686
        %v719 = vrsqrt.pop %v687
        %v720 = vrsqrt.pop %v688
        %v721 = vmul.f32 %v403, %v689
        %v722 = vmul.f32 %v408, %v690
        %v723 = vmul.f32 %v413, %v691
        %v724 = vmul.f32 %v418, %v692
        %v725 = vmul.f32 %v423, %v693
        %v726 = vmul.f32 %v428, %v694
        %v727 = vmul.f32 %v433, %v695
        %v728 = vmul.f32 %v438, %v696
        %v729 = vmul.f32 %v443, %v697
        %v730 = vmul.f32 %v448, %v698
        %v731 = vmul.f32 %v453, %v699
        %v732 = vmul.f32 %v458, %v700
        %v733 = vmul.f32 %v463, %v701
        %v734 = vmul.f32 %v468, %v702
        %v735 = vmul.f32 %v473, %v703
        %v736 = vmul.f32 %v478, %v704
        %v737 = vmul.f32 %v483, %v705
        %v738 = vmul.f32 %v488, %v706
        %v739 = vmul.f32 %v493, %v707
        %v740 = vmul.f32 %v498, %v708
        %v741 = vmul.f32 %v503, %v709
        %v742 = vmul.f32 %v508, %v710
        %v743 = vmul.f32 %v513, %v711
        %v744 = vmul.f32 %v518, %v712
        %v745 = vmul.f32 %v523, %v713
        %v746 = vmul.f32 %v528, %v714
        %v747 = vmul.f32 %v533, %v715
        %v748 = vmul.f32 %v538, %v716
        %v749 = vmul.f32 %v543, %v717
        %v750 = vmul.f32 %v548, %v718
        %v751 = vmul.f32 %v553, %v719
        %v752 = vmul.f32 %v558, %v720
        %753 = vst [vmem:[%s176] sm:$0xff] %v721
        %754 = vst [vmem:[%s176 + $0x8] sm:$0xff] %v722
        %755 = vst [vmem:[%s176 + $0x10] sm:$0xff] %v723
        %756 = vst [vmem:[%s176 + $0x18] sm:$0xff] %v724
        %757 = vst [vmem:[%s176 + $0x20] sm:$0xff] %v725
        %758 = vst [vmem:[%s176 + $0x28] sm:$0xff] %v726
        %759 = vst [vmem:[%s176 + $0x30] sm:$0xff] %v727
        %760 = vst [vmem:[%s176 + $0x38] sm:$0xff] %v728
        %761 = vst [vmem:[%s176 + $0x40] sm:$0xff] %v729
        %762 = vst [vmem:[%s176 + $0x48] sm:$0xff] %v730
        %763 = vst [vmem:[%s176 + $0x50] sm:$0xff] %v731
        %764 = vst [vmem:[%s176 + $0x58] sm:$0xff] %v732
        %765 = vst [vmem:[%s176 + $0x60] sm:$0xff] %v733
        %766 = vst [vmem:[%s176 + $0x68] sm:$0xff] %v734
        %767 = vst [vmem:[%s176 + $0x70] sm:$0xff] %v735
        %768 = vst [vmem:[%s176 + $0x78] sm:$0xff] %v736
        %769 = vst [vmem:[%s176 + $0x80] sm:$0xff] %v737
        %770 = vst [vmem:[%s176 + $0x88] sm:$0xff] %v738
        %771 = vst [vmem:[%s176 + $0x90] sm:$0xff] %v739
        %772 = vst [vmem:[%s176 + $0x98] sm:$0xff] %v740
        %773 = vst [vmem:[%s176 + $0xa0] sm:$0xff] %v741
        %774 = vst [vmem:[%s176 + $0xa8] sm:$0xff] %v742
        %775 = vst [vmem:[%s176 + $0xb0] sm:$0xff] %v743
        %776 = vst [vmem:[%s176 + $0xb8] sm:$0xff] %v744
        %777 = vst [vmem:[%s176 + $0xc0] sm:$0xff] %v745
        %778 = vst [vmem:[%s176 + $0xc8] sm:$0xff] %v746
        %779 = vst [vmem:[%s176 + $0xd0] sm:$0xff] %v747
        %780 = vst [vmem:[%s176 + $0xd8] sm:$0xff] %v748
        %781 = vst [vmem:[%s176 + $0xe0] sm:$0xff] %v749
        %782 = vst [vmem:[%s176 + $0xe8] sm:$0xff] %v750
        %783 = vst [vmem:[%s176 + $0xf0] sm:$0xff] %v751
        %784 = vst [vmem:[%s176 + $0xf8] sm:$0xff] %v752
        %s785 = sand.u32 %s93, 1
        %s786 = scalar_lea.sflag [#allocation3], %s785
        %s787 = sand.u32 %s93, 1
        %s788 = smul.addr %s787, 256
        %s789 = scalar_lea.vmem [#allocation2], %s788
        // Predicated region
        $region33: #{tpu_custom_call.1} parent=31 // pred_check
          %p790 = pneg %p103
        $region34: #{tpu_custom_call.1} parent=31 // pred_check_branch
          %792 = sbr.rel (%p790) target = $region36
        $region35: #{tpu_custom_call.1} parent=31 // pred_region
          %s793 = smul.u32 32, %s17
          %s794 = ssub.s32 75, %s793
          %p795 = scmp.lt.s32.totalorder %s794, 32
          %s796 = scalar_select %p795, %s794, 32
          %s797 = smul.u32 128, %s796
          %s799 = ssub.s32 4096, %s797
          %800 = vsyncadd %s786, %s799
          %p801 = scmp.ne.s32.totalorder 0, %s797
          %s802 = smul.addr %s793, 128
          %s803 = scalar_lea.hbm %s3, %s802
          %s804 = smul.u32 8, %s796
          %s805 = sshll.u32 %s789, 4
          %s806 = int_to_ptr.vmem [resolvable:$true] %s805
          %s807 = sshll.u32 %s804, 4
          %811 = dma.vmem_to_hbm [thread:$0]  (%p801), %s806, %s807, %s803, %s786, 128, 128, 8
        $region36: #{tpu_custom_call.1} parent=31 // pred_fallthru
          _
      $region32: #{tpu_custom_call.1} parent=5 // pred_fallthru
        _
      %p812 = scmp.le.s32.totalorder 2, %s12
      // Predicated region
      $region37: #{tpu_custom_call.1} parent=5 // pred_check
        %p813 = pneg %p812
      $region38: #{tpu_custom_call.1} parent=5 // pred_check_branch
        %815 = sbr.rel (%p813) target = $region40
      $region39: #{tpu_custom_call.1} parent=5 // pred_region
        %s816 = ssub.s32 %s12, 2
        // Predicated region
        $region41: #{tpu_custom_call.1} parent=39 // pred_check
          %p817 = pneg %p109
        $region42: #{tpu_custom_call.1} parent=39 // pred_check_branch
          %819 = sbr.rel (%p817) target = $region44
        $region43: #{tpu_custom_call.1} parent=39 // pred_region
          %s820 = sand.u32 %s94, 1
          %s821 = scalar_lea.sflag [#allocation3], %s820
          %s822 = sand.u32 %s94, 1
          %s823 = smul.addr %s822, 256
          %s824 = scalar_lea.vmem [#allocation2], %s823
          %825 = dma.done %s821, 4096
        $region44: #{tpu_custom_call.1} parent=39 // pred_fallthru
          _
      $region40: #{tpu_custom_call.1} parent=5 // pred_fallthru
        _
    $region6: #{tpu_custom_call.1} parent=1 // loop_footer
      %s16 = sadd.s32 1, %s12
    $region7: #{tpu_custom_call.1} parent=1 // loop_footer_branch
      %11 = sbr.rel target = $region3
    $region8: #{tpu_custom_call.1} parent=1 // loop_exit
      _
    %826 = vsyncpa [#allocation3], 1
    %s827 = scalar_lea.sflag [#allocation3], 1
    %828 = vsyncpa %s827, 1

</llo_original>
